<compile_context>
chip_gen: v5e
topology: v5e:2x2
jax: 0.10.0
libtpu: 0.0.40
codegen_flags: <defaults>
</compile_context>

<pallas_src>
import jax
import jax.numpy as jnp
from jax.experimental import pallas as pl
from jax.experimental.pallas import tpu as pltpu

# ---- model dimensions (from the PyTorch module) ----
NUM_FEATURE    = 768            # BERT hidden size
EMB_DIM        = 32             # embedding_dim
NUM_EMBEDDINGS = 16             # num_embeddings
HIDDEN         = 256            # Regressor hidden width
IN_DIM         = NUM_FEATURE + EMB_DIM   # 800
BN_EPS         = 1e-5


def regressor_head_kernel(x_ref, ids_ref, table_ref, w1_ref, w2_ref, b2_ref,
                          o_ref):
    """Fused Linear(768->256) + embedding/BN bias (in-kernel gather) + ReLU
    + Linear(256->1)."""
    tb = x_ref.shape[0]

    # Linear 1 on the lane-aligned CLS slab (MXU), f32 accumulation.
    h = jnp.dot(x_ref[...], w1_ref[...],
                preferred_element_type=jnp.float32)            # [TB, 256]

    # Embedding-branch + b1 + BN-shift, gathered in-kernel: one-hot(type_id) @
    # table.  K = 16 so this is a single (padded) MXU pass, essentially free
    # next to the 768-deep main matmul, and it replaces 1 KB/row of HBM bias
    # traffic with 4 B/row of int32 ids.
    ids = ids_ref[...]                                         # [TB, 1] int32
    cols = jax.lax.broadcasted_iota(jnp.int32, (tb, NUM_EMBEDDINGS), 1)
    onehot = (ids == cols).astype(jnp.float32)                 # [TB, 16]
    h = h + jnp.dot(onehot, table_ref[...],
                    preferred_element_type=jnp.float32)        # [TB, 256]

    # ReLU (VPU).  Dropout(p=0.2) -> identity in eval mode.
    h = jnp.maximum(h, 0.0)

    # Linear 2 (out_features == 1): elementwise mul + lane reduce (VPU/XLU
    # slots, hidden behind MXU/DMA).  Output is 4 B/row -> store shape (TB, 1)
    # costs only ~TB/8 masked vst's per tile, negligible vs the 3 KB/row input.
    y = jnp.sum(h * w2_ref[...], axis=-1, keepdims=True) + b2_ref[...]  # [TB,1]
    o_ref[...] = y


def _round_up(x, m):
    return ((x + m - 1) // m) * m


def regressor_head(cls_vec, type_id, params, *, tile_b=1024,
                   compute_dtype=jnp.float32):
    """cls_vec: [B, 768], type_id: [B] int32 -> [B, 1] float32.

    tile_b: batch tile fed to the MXU per grid step (multiple of 8).  1024 is a
    good default on v5e/v6e/v7x (sweep 512/1024/2048); it is clamped down for
    small batches.
    compute_dtype: jnp.float32 or jnp.bfloat16 for the cls/W1 matmul operands
    (accumulation stays f32).  bf16 halves HBM traffic on v6e/v7x.
    """
    B = cls_vec.shape[0]

    # ---- fold BatchNorm1d (eval) into Linear 1 ----
    scale = params["bn_gamma"] * jax.lax.rsqrt(params["bn_var"] + BN_EPS)  # [256]
    shift = params["bn_beta"] - params["bn_mean"] * scale                  # [256]
    w1_f  = params["w1"] * scale[None, :]                                  # [800, 256]
    b1_f  = params["b1"] * scale + shift                                   # [256]

    # ---- split off the embedding branch and fold it into a per-type table ----
    w1_cls = w1_f[:NUM_FEATURE]                                            # [768, 256]
    w1_emb = w1_f[NUM_FEATURE:]                                            # [32, 256]
    type_table = (params["embedding"] @ w1_emb
                  + b1_f[None, :]).astype(jnp.float32)                     # [16, 256]

    x   = cls_vec.astype(compute_dtype)
    ids = type_id.astype(jnp.int32).reshape(B, 1)                          # [B, 1]
    w1c = w1_cls.astype(compute_dtype)
    w2t = params["w2"].reshape(1, HIDDEN).astype(jnp.float32)              # [1, 256]
    b2  = params["b2"].reshape(1, 1).astype(jnp.float32)                   # [1, 1]

    # ---- batch tiling: clamp tile for tiny batches, pad to a tile multiple ----
    b8 = _round_up(B, 8)
    tb = min(tile_b, b8)                 # tile_b and b8 are multiples of 8
    b_pad = _round_up(B, tb)
    if b_pad != B:
        x = jnp.pad(x, ((0, b_pad - B), (0, 0)))
        ids = jnp.pad(ids, ((0, b_pad - B), (0, 0)))

    grid = (b_pad // tb,)
    full = lambda shp: pl.BlockSpec(shp, lambda i: (0, 0))

    out = pl.pallas_call(
        regressor_head_kernel,
        out_shape=jax.ShapeDtypeStruct((b_pad, 1), jnp.float32),
        grid_spec=pltpu.PrefetchScalarGridSpec(
            num_scalar_prefetch=0,
            grid=grid,
            in_specs=[
                pl.BlockSpec((tb, NUM_FEATURE), lambda i: (i, 0)),  # cls tile
                pl.BlockSpec((tb, 1), lambda i: (i, 0)),            # type ids
                full((NUM_EMBEDDINGS, HIDDEN)),                     # type table
                full((NUM_FEATURE, HIDDEN)),                        # W1' (cls)
                full((1, HIDDEN)),                                  # W2^T
                full((1, 1)),                                       # b2
            ],
            out_specs=pl.BlockSpec((tb, 1), lambda i: (i, 0)),
        ),
        compiler_params=pltpu.CompilerParams(
            dimension_semantics=("parallel",),
            # Explicit cap with headroom: covers tile_b up to ~2k in f32 and
            # stays inside physical VMEM on v5e/v6e/v7x; raises v5e's 16 MiB
            # scoped default for large tiles.
            vmem_limit_bytes=32 * 1024 * 1024,
        ),
    )(x, ids, type_table, w1c, w2t, b2)
    return out[:B]


def transformer_entity_regressor_forward(cls_vec, type_id, params, *,
                                         tile_b=1024,
                                         compute_dtype=jnp.float32):
    """cls_vec: [B, 768] (transformer CLS output), type_id: [B] int32."""
    return regressor_head(cls_vec, type_id, params,
                          tile_b=tile_b, compute_dtype=compute_dtype)


def init_params(key):
    ks = jax.random.split(key, 8)
    return {
        "embedding": jax.random.normal(ks[0], (NUM_EMBEDDINGS, EMB_DIM), jnp.float32),
        "w1": jax.random.normal(ks[1], (IN_DIM, HIDDEN), jnp.float32) * 0.02,
        "b1": jax.random.normal(ks[2], (HIDDEN,), jnp.float32) * 0.01,
        "bn_gamma": 1.0 + 0.1 * jax.random.normal(ks[3], (HIDDEN,), jnp.float32),
        "bn_beta": 0.1 * jax.random.normal(ks[4], (HIDDEN,), jnp.float32),
        "bn_mean": 0.05 * jax.random.normal(ks[5], (HIDDEN,), jnp.float32),
        "bn_var": jnp.ones((HIDDEN,), jnp.float32),
        "w2": jax.random.normal(ks[6], (HIDDEN, 1), jnp.float32) * 0.05,
        "b2": jax.random.normal(ks[7], (1,), jnp.float32) * 0.01,
    }


def reference_forward(cls_vec, type_id, params):
    """Unfused pure-JAX reference of the PyTorch head (eval mode)."""
    emb = jnp.take(params["embedding"], type_id, axis=0)
    x = jnp.concatenate([cls_vec, emb], axis=1)
    h = x @ params["w1"] + params["b1"]
    scale = params["bn_gamma"] / jnp.sqrt(params["bn_var"] + BN_EPS)
    shift = params["bn_beta"] - params["bn_mean"] * scale
    h = jnp.maximum(h * scale + shift, 0.0)
    return h @ params["w2"] + params["b2"]


if __name__ == "__main__":
    key = jax.random.PRNGKey(0)
    k_p, k_cls, k_id = jax.random.split(key, 3)

    params = init_params(k_p)

    # --- small single-tile batch (strict f32 check) ---
    B = 8
    cls_vec = jax.random.normal(k_cls, (B, NUM_FEATURE), jnp.float32)
    type_id = jax.random.randint(k_id, (B,), 0, NUM_EMBEDDINGS, jnp.int32)
    ref = reference_forward(cls_vec, type_id, params)

    out = transformer_entity_regressor_forward(cls_vec, type_id, params,
                                               tile_b=1024,
                                               compute_dtype=jnp.float32)
    out = jax.block_until_ready(out)
    assert out.shape == (B, 1)
    assert jnp.allclose(out, ref, atol=1e-3, rtol=1e-3), (out, ref)

    # bf16 operand path (v6e/v7x bandwidth option): loose tolerance check.
    out_bf16 = transformer_entity_regressor_forward(cls_vec, type_id, params,
                                                    tile_b=1024,
                                                    compute_dtype=jnp.bfloat16)
    out_bf16 = jax.block_until_ready(out_bf16)
    assert out_bf16.shape == (B, 1)
    assert jnp.allclose(out_bf16, ref, atol=5e-2, rtol=5e-2), (out_bf16, ref)

    # --- multi-tile + padding path (grid > 1, B not a multiple of the tile) ---
    B2 = 40
    k_cls2, k_id2 = jax.random.split(jax.random.PRNGKey(1))
    cls_vec2 = jax.random.normal(k_cls2, (B2, NUM_FEATURE), jnp.float32)
    type_id2 = jax.random.randint(k_id2, (B2,), 0, NUM_EMBEDDINGS, jnp.int32)
    ref2 = reference_forward(cls_vec2, type_id2, params)
    out2 = transformer_entity_regressor_forward(cls_vec2, type_id2, params,
                                                tile_b=16,
                                                compute_dtype=jnp.float32)
    out2 = jax.block_until_ready(out2)
    assert out2.shape == (B2, 1)
    assert jnp.allclose(out2, ref2, atol=1e-3, rtol=1e-3), (out2, ref2)

    print("KERNEL_OK")
</pallas_src>

<mosaic_0001>
module attributes {stable_mosaic.version = 11 : i64} {
  func.func @regressor_head_kernel(%arg0: i32, %arg1: memref<8x768xf32, #tpu.memory_space<vmem>>, %arg2: memref<8x1xi32, #tpu.memory_space<vmem>>, %arg3: memref<16x256xf32, #tpu.memory_space<vmem>>, %arg4: memref<768x256xf32, #tpu.memory_space<vmem>>, %arg5: memref<1x256xf32, #tpu.memory_space<vmem>>, %arg6: memref<1x1xf32, #tpu.memory_space<vmem>>, %arg7: memref<8x1xf32, #tpu.memory_space<vmem>>) attributes {dimension_semantics = [#tpu.dimension_semantics<parallel>], iteration_bounds = array<i64: 1>, scalar_prefetch = 0 : i64, scratch_operands = 0 : i64, tpu.core_type = #tpu.core_type<tc>, window_params = [{transform_indices = @transform_0, window_bounds = array<i64: 8, 768>}, {transform_indices = @transform_1, window_bounds = array<i64: 8, 1>}, {pipeline_mode = #tpu.pipeline_mode<synchronous>, transform_indices = @transform_2, window_bounds = array<i64: 16, 256>}, {pipeline_mode = #tpu.pipeline_mode<synchronous>, transform_indices = @transform_3, window_bounds = array<i64: 768, 256>}, {pipeline_mode = #tpu.pipeline_mode<synchronous>, transform_indices = @transform_4, window_bounds = array<i64: 1, 256>}, {pipeline_mode = #tpu.pipeline_mode<synchronous>, transform_indices = @transform_5, window_bounds = array<i64: 1, 1>}, {transform_indices = @transform_6, window_bounds = array<i64: 8, 1>}]} {
    %c0 = arith.constant 0 : index
    %c0_0 = arith.constant 0 : index
    %0 = vector.load %arg1[%c0, %c0_0] : memref<8x768xf32, #tpu.memory_space<vmem>>, vector<8x768xf32>
    %c0_1 = arith.constant 0 : index
    %c0_2 = arith.constant 0 : index
    %1 = vector.load %arg4[%c0_1, %c0_2] : memref<768x256xf32, #tpu.memory_space<vmem>>, vector<768x256xf32>
    %cst = arith.constant dense<0.000000e+00> : vector<8x256xf32>
    %2 = tpu.matmul %0, %1, %cst {dimension_numbers = #tpu.dot_dimension_numbers<[1], [0], [0], [1], [0, 0, 1, 1], [], []>} : vector<8x768xf32>, vector<768x256xf32>, vector<8x256xf32> -> vector<8x256xf32>
    %c0_3 = arith.constant 0 : index
    %c0_4 = arith.constant 0 : index
    %3 = vector.load %arg2[%c0_3, %c0_4] : memref<8x1xi32, #tpu.memory_space<vmem>>, vector<8x1xi32>
    %4 = tpu.iota {dimensions = array<i32: 1>} : vector<8x16xi32>
    %5 = vector.broadcast %3 : vector<8x1xi32> to vector<8x16xi32>
    %6 = arith.cmpi eq, %5, %4 : vector<8x16xi32>
    %7 = arith.extui %6 : vector<8x16xi1> to vector<8x16xi32>
    %8 = arith.sitofp %7 : vector<8x16xi32> to vector<8x16xf32>
    %c0_5 = arith.constant 0 : index
    %c0_6 = arith.constant 0 : index
    %9 = vector.load %arg3[%c0_5, %c0_6] : memref<16x256xf32, #tpu.memory_space<vmem>>, vector<16x256xf32>
    %cst_7 = arith.constant dense<0.000000e+00> : vector<8x256xf32>
    %10 = tpu.matmul %8, %9, %cst_7 {dimension_numbers = #tpu.dot_dimension_numbers<[1], [0], [0], [1], [0, 0, 1, 1], [], []>} : vector<8x16xf32>, vector<16x256xf32>, vector<8x256xf32> -> vector<8x256xf32>
    %11 = arith.addf %2, %10 : vector<8x256xf32>
    %cst_8 = arith.constant 0.000000e+00 : f32
    %12 = vector.broadcast %cst_8 : f32 to vector<8x256xf32>
    %13 = arith.maximumf %11, %12 : vector<8x256xf32>
    %c0_9 = arith.constant 0 : index
    %c0_10 = arith.constant 0 : index
    %14 = vector.load %arg5[%c0_9, %c0_10] : memref<1x256xf32, #tpu.memory_space<vmem>>, vector<1x256xf32>
    %15 = vector.broadcast %14 : vector<1x256xf32> to vector<8x256xf32>
    %16 = arith.mulf %13, %15 : vector<8x256xf32>
    %cst_11 = arith.constant dense<0.000000e+00> : vector<8xf32>
    %17 = vector.multi_reduction <add>, %16, %cst_11 [1] : vector<8x256xf32> to vector<8xf32>
    %18 = vector.shape_cast %17 : vector<8xf32> to vector<8x1xf32>
    %c0_12 = arith.constant 0 : index
    %c0_13 = arith.constant 0 : index
    %19 = vector.load %arg6[%c0_12, %c0_13] : memref<1x1xf32, #tpu.memory_space<vmem>>, vector<1x1xf32>
    %20 = vector.broadcast %19 : vector<1x1xf32> to vector<8x1xf32>
    %21 = arith.addf %18, %20 : vector<8x1xf32>
    %c0_14 = arith.constant 0 : index
    %c0_15 = arith.constant 0 : index
    %22 = vector.load %arg7[%c0_14, %c0_15] : memref<8x1xf32, #tpu.memory_space<vmem>>, vector<8x1xf32>
    tpu.vector_store %arg7[%c0_14, %c0_15], %21 {strides = array<i32>} : memref<8x1xf32, #tpu.memory_space<vmem>>, vector<8x1xf32>,
    return
  }
  func.func @transform_0(%arg0: i32) -> (i32, i32) {
    %c0_i32 = arith.constant 0 : i32
    %c0_i32_0 = arith.constant 0 : i32
    return %arg0, %c0_i32 : i32, i32
  }
  func.func @transform_1(%arg0: i32) -> (i32, i32) {
    %c0_i32 = arith.constant 0 : i32
    %c0_i32_0 = arith.constant 0 : i32
    return %arg0, %c0_i32 : i32, i32
  }
  func.func @transform_2(%arg0: i32) -> (i32, i32) {
    %c0_i32 = arith.constant 0 : i32
    %c0_i32_0 = arith.constant 0 : i32
    %c0_i32_1 = arith.constant 0 : i32
    return %c0_i32, %c0_i32_0 : i32, i32
  }
  func.func @transform_3(%arg0: i32) -> (i32, i32) {
    %c0_i32 = arith.constant 0 : i32
    %c0_i32_0 = arith.constant 0 : i32
    %c0_i32_1 = arith.constant 0 : i32
    return %c0_i32, %c0_i32_0 : i32, i32
  }
  func.func @transform_4(%arg0: i32) -> (i32, i32) {
    %c0_i32 = arith.constant 0 : i32
    %c0_i32_0 = arith.constant 0 : i32
    %c0_i32_1 = arith.constant 0 : i32
    return %c0_i32, %c0_i32_0 : i32, i32
  }
  func.func @transform_5(%arg0: i32) -> (i32, i32) {
    %c0_i32 = arith.constant 0 : i32
    %c0_i32_0 = arith.constant 0 : i32
    %c0_i32_1 = arith.constant 0 : i32
    return %c0_i32, %c0_i32_0 : i32, i32
  }
  func.func @transform_6(%arg0: i32) -> (i32, i32) {
    %c0_i32 = arith.constant 0 : i32
    %c0_i32_0 = arith.constant 0 : i32
    return %arg0, %c0_i32 : i32, i32
  }
}

</mosaic_0001>

<llo_original>
// kernel: tpu_custom_call.1
$region0: #{tpu_custom_call.1}
  #allocation0 [shape = 'u32[]', space=smem, size = 0x4, offset = 0x4, fixed_abs, tag = 'smem constant byte address 0x4 - core index']
  #allocation1 [shape = 'u32[72,128]{1,0:T(1,128)}', space=vmem, size = 0x9000, scoped, tag = 'internal scratch']
  #allocation2 [shape = 'f32[1,1]{1,0:T(1,128)S(1)}', space=vmem, size = 0x200, scoped, tag = 'scoped memory for tpu_custom_call.1']
  %s0 = inlined_call_operand.hbm [shape: f32[8,768], index: 0, kind: input, shape index: {}]
  %s1 = inlined_call_operand.vmem [shape: s32[8,1], index: 1, kind: input, shape index: {}]
  %s2 = inlined_call_operand.hbm [shape: f32[16,256], index: 2, kind: input, shape index: {}]
  %s3 = inlined_call_operand.hbm [shape: f32[768,256], index: 3, kind: input, shape index: {}]
  %s4 = inlined_call_operand.vmem [shape: f32[1,256], index: 4, kind: input, shape index: {}]
  %s5 = inlined_call_operand.<no memory space> [shape: f32[1,1], index: 5, kind: input, shape index: {}]
  %s6 = inlined_call_operand.vmem [shape: f32[8,1], index: 6, kind: output, shape index: {}]
  %s7 = sld [smem:[#allocation0]]
  $region46: #{tpu_custom_call.1} parent=0
    _
  %s9 = ssub.s32 1, %s7
  %s10 = scalar_select 0, %s9, %s7
  %v11 = vstv %s5
  %12 = vst [vmem:[#allocation2] sm:$0x1] %v11
  $region1: #{tpu_custom_call.1} parent=0
    #allocation3 [shape = 'u8[24576]{0}', space=vmem, size = 0x6000, scoped, tag = 'input window, operand 0, single buffered']
    #allocation4 [shape = 's32[1]{0}', space=sflag, size = 0x4, scoped, tag = 'scoped memory for tpu_custom_call.1']
    #allocation5 [shape = 'u8[16384]{0}', space=vmem, size = 0x4000, scoped, tag = 'input window, operand 2, single buffered']
    #allocation6 [shape = 's32[1]{0}', space=sflag, size = 0x4, scoped, tag = 'scoped memory for tpu_custom_call.1']
    #allocation7 [shape = 'u8[786432]{0}', space=vmem, size = 0xc0000, scoped, tag = 'input window, operand 3, single buffered']
    %13 = vsyncpa [#allocation4], 0
    %14 = vsyncpa [#allocation6], 0
    // Predicated region
    $region2: #{tpu_custom_call.1} parent=1 // pred_check
      _
    $region3: #{tpu_custom_call.1} parent=1 // pred_check_branch
      %16 = sbr.rel (0) target = $region5
    $region4: #{tpu_custom_call.1} parent=1 // pred_region
      %18 = vsyncadd [#allocation4], 0
      %s20 = sshll.u32 %s0, 4
      %s21 = int_to_ptr.hbm [resolvable:$true] %s20
      %s22 = sshll.u32 [#allocation3], 4
      %s23 = int_to_ptr.vmem [resolvable:$true] %s22
      %25 = dma.hbm_to_vmem [thread:$0]  %s21, 768, %s23, [#allocation4]
    $region5: #{tpu_custom_call.1} parent=1 // pred_fallthru
      _
    // Predicated region
    $region6: #{tpu_custom_call.1} parent=1 // pred_check
      _
    $region7: #{tpu_custom_call.1} parent=1 // pred_check_branch
      %27 = sbr.rel (0) target = $region9
    $region8: #{tpu_custom_call.1} parent=1 // pred_region
      _
    $region9: #{tpu_custom_call.1} parent=1 // pred_fallthru
      _
    // Predicated region
    $region10: #{tpu_custom_call.1} parent=1 // pred_check
      _
    $region11: #{tpu_custom_call.1} parent=1 // pred_check_branch
      %29 = sbr.rel (0) target = $region13
    $region12: #{tpu_custom_call.1} parent=1 // pred_region
      %31 = vsyncadd [#allocation6], 0
      %s32 = sshll.u32 %s2, 4
      %s33 = int_to_ptr.hbm [resolvable:$true] %s32
      %s34 = sshll.u32 [#allocation5], 4
      %s35 = int_to_ptr.vmem [resolvable:$true] %s34
      %40 = dma.hbm_to_vmem [thread:$0]  %s33, 512, %s35, [#allocation6], 256, 256, 16
    $region13: #{tpu_custom_call.1} parent=1 // pred_fallthru
      _
    // Predicated region
    $region14: #{tpu_custom_call.1} parent=1 // pred_check
      _
    $region15: #{tpu_custom_call.1} parent=1 // pred_check_branch
      %42 = sbr.rel (0) target = $region17
    $region16: #{tpu_custom_call.1} parent=1 // pred_region
      %44 = vsyncadd [#allocation6], 0
      %s45 = sshll.u32 %s3, 4
      %s46 = int_to_ptr.hbm [resolvable:$true] %s45
      %s47 = sshll.u32 [#allocation7], 4
      %s48 = int_to_ptr.vmem [resolvable:$true] %s47
      %53 = dma.hbm_to_vmem [thread:$0]  %s46, 24576, %s48, [#allocation6], 256, 256, 16
    $region17: #{tpu_custom_call.1} parent=1 // pred_fallthru
      _
    // Predicated region
    $region18: #{tpu_custom_call.1} parent=1 // pred_check
      _
    $region19: #{tpu_custom_call.1} parent=1 // pred_check_branch
      %55 = sbr.rel (0) target = $region21
    $region20: #{tpu_custom_call.1} parent=1 // pred_region
      _
    $region21: #{tpu_custom_call.1} parent=1 // pred_fallthru
      _
    // Predicated region
    $region22: #{tpu_custom_call.1} parent=1 // pred_check
      _
    $region23: #{tpu_custom_call.1} parent=1 // pred_check_branch
      %57 = sbr.rel (0) target = $region25
    $region24: #{tpu_custom_call.1} parent=1 // pred_region
      _
    $region25: #{tpu_custom_call.1} parent=1 // pred_fallthru
      _
    // Predicated region
    $region26: #{tpu_custom_call.1} parent=1 // pred_check
      _
    $region27: #{tpu_custom_call.1} parent=1 // pred_check_branch
      %59 = sbr.rel (0) target = $region29
    $region28: #{tpu_custom_call.1} parent=1 // pred_region
      %61 = dma.done [#allocation4], 768
    $region29: #{tpu_custom_call.1} parent=1 // pred_fallthru
      _
    // Predicated region
    $region30: #{tpu_custom_call.1} parent=1 // pred_check
      _
    $region31: #{tpu_custom_call.1} parent=1 // pred_check_branch
      %63 = sbr.rel (0) target = $region33
    $region32: #{tpu_custom_call.1} parent=1 // pred_region
      %65 = dma.done [#allocation6], 512
    $region33: #{tpu_custom_call.1} parent=1 // pred_fallthru
      _
    // Predicated region
    $region34: #{tpu_custom_call.1} parent=1 // pred_check
      _
    $region35: #{tpu_custom_call.1} parent=1 // pred_check_branch
      %67 = sbr.rel (0) target = $region37
    $region36: #{tpu_custom_call.1} parent=1 // pred_region
      %69 = dma.done [#allocation6], 24576
    $region37: #{tpu_custom_call.1} parent=1 // pred_fallthru
      _
    %v70 = vld [vmem:[#allocation3] sm:$0xff]
    %v71 = vld [vmem:[#allocation3 + $0x8] sm:$0xff]
    %v72 = vld [vmem:[#allocation3 + $0x10] sm:$0xff]
    %v73 = vld [vmem:[#allocation3 + $0x18] sm:$0xff]
    %v74 = vld [vmem:[#allocation3 + $0x20] sm:$0xff]
    %v75 = vld [vmem:[#allocation3 + $0x28] sm:$0xff]
    %v76 = vld [vmem:[#allocation7] sm:$0xff]
    %v77 = vld [vmem:[#allocation7 + $0x8] sm:$0xff]
    %v78 = vld [vmem:[#allocation7 + $0x10] sm:$0xff]
    %v79 = vld [vmem:[#allocation7 + $0x18] sm:$0xff]
    %v80 = vld [vmem:[#allocation7 + $0x20] sm:$0xff]
    %v81 = vld [vmem:[#allocation7 + $0x28] sm:$0xff]
    %v82 = vld [vmem:[#allocation7 + $0x30] sm:$0xff]
    %v83 = vld [vmem:[#allocation7 + $0x38] sm:$0xff]
    %v84 = vld [vmem:[#allocation7 + $0x40] sm:$0xff]
    %v85 = vld [vmem:[#allocation7 + $0x48] sm:$0xff]
    %v86 = vld [vmem:[#allocation7 + $0x50] sm:$0xff]
    %v87 = vld [vmem:[#allocation7 + $0x58] sm:$0xff]
    %v88 = vld [vmem:[#allocation7 + $0x60] sm:$0xff]
    %v89 = vld [vmem:[#allocation7 + $0x68] sm:$0xff]
    %v90 = vld [vmem:[#allocation7 + $0x70] sm:$0xff]
    %v91 = vld [vmem:[#allocation7 + $0x78] sm:$0xff]
    %v92 = vld [vmem:[#allocation7 + $0x80] sm:$0xff]
    %v93 = vld [vmem:[#allocation7 + $0x88] sm:$0xff]
    %v94 = vld [vmem:[#allocation7 + $0x90] sm:$0xff]
    %v95 = vld [vmem:[#allocation7 + $0x98] sm:$0xff]
    %v96 = vld [vmem:[#allocation7 + $0xa0] sm:$0xff]
    %v97 = vld [vmem:[#allocation7 + $0xa8] sm:$0xff]
    %v98 = vld [vmem:[#allocation7 + $0xb0] sm:$0xff]
    %v99 = vld [vmem:[#allocation7 + $0xb8] sm:$0xff]
    %v100 = vld [vmem:[#allocation7 + $0xc0] sm:$0xff]
    %v101 = vld [vmem:[#allocation7 + $0xc8] sm:$0xff]
    %v102 = vld [vmem:[#allocation7 + $0xd0] sm:$0xff]
    %v103 = vld [vmem:[#allocation7 + $0xd8] sm:$0xff]
    %v104 = vld [vmem:[#allocation7 + $0xe0] sm:$0xff]
    %v105 = vld [vmem:[#allocation7 + $0xe8] sm:$0xff]
    %v106 = vld [vmem:[#allocation7 + $0xf0] sm:$0xff]
    %v107 = vld [vmem:[#allocation7 + $0xf8] sm:$0xff]
    %v108 = vld [vmem:[#allocation7 + $0x100] sm:$0xff]
    %v109 = vld [vmem:[#allocation7 + $0x108] sm:$0xff]
    %v110 = vld [vmem:[#allocation7 + $0x110] sm:$0xff]
    %v111 = vld [vmem:[#allocation7 + $0x118] sm:$0xff]
    %v112 = vld [vmem:[#allocation7 + $0x120] sm:$0xff]
    %v113 = vld [vmem:[#allocation7 + $0x128] sm:$0xff]
    %v114 = vld [vmem:[#allocation7 + $0x130] sm:$0xff]
    %v115 = vld [vmem:[#allocation7 + $0x138] sm:$0xff]
    %v116 = vld [vmem:[#allocation7 + $0x140] sm:$0xff]
    %v117 = vld [vmem:[#allocation7 + $0x148] sm:$0xff]
    %v118 = vld [vmem:[#allocation7 + $0x150] sm:$0xff]
    %v119 = vld [vmem:[#allocation7 + $0x158] sm:$0xff]
    %v120 = vld [vmem:[#allocation7 + $0x160] sm:$0xff]
    %v121 = vld [vmem:[#allocation7 + $0x168] sm:$0xff]
    %v122 = vld [vmem:[#allocation7 + $0x170] sm:$0xff]
    %v123 = vld [vmem:[#allocation7 + $0x178] sm:$0xff]
    %v124 = vld [vmem:[#allocation7 + $0x180] sm:$0xff]
    %v125 = vld [vmem:[#allocation7 + $0x188] sm:$0xff]
    %v126 = vld [vmem:[#allocation7 + $0x190] sm:$0xff]
    %v127 = vld [vmem:[#allocation7 + $0x198] sm:$0xff]
    %v128 = vld [vmem:[#allocation7 + $0x1a0] sm:$0xff]
    %v129 = vld [vmem:[#allocation7 + $0x1a8] sm:$0xff]
    %v130 = vld [vmem:[#allocation7 + $0x1b0] sm:$0xff]
    %v131 = vld [vmem:[#allocation7 + $0x1b8] sm:$0xff]
    %v132 = vld [vmem:[#allocation7 + $0x1c0] sm:$0xff]
    %v133 = vld [vmem:[#allocation7 + $0x1c8] sm:$0xff]
    %v134 = vld [vmem:[#allocation7 + $0x1d0] sm:$0xff]
    %v135 = vld [vmem:[#allocation7 + $0x1d8] sm:$0xff]
    %v136 = vld [vmem:[#allocation7 + $0x1e0] sm:$0xff]
    %v137 = vld [vmem:[#allocation7 + $0x1e8] sm:$0xff]
    %v138 = vld [vmem:[#allocation7 + $0x1f0] sm:$0xff]
    %v139 = vld [vmem:[#allocation7 + $0x1f8] sm:$0xff]
    %v140 = vld [vmem:[#allocation7 + $0x200] sm:$0xff]
    %v141 = vld [vmem:[#allocation7 + $0x208] sm:$0xff]
    %v142 = vld [vmem:[#allocation7 + $0x210] sm:$0xff]
    %v143 = vld [vmem:[#allocation7 + $0x218] sm:$0xff]
    %v144 = vld [vmem:[#allocation7 + $0x220] sm:$0xff]
    %v145 = vld [vmem:[#allocation7 + $0x228] sm:$0xff]
    %v146 = vld [vmem:[#allocation7 + $0x230] sm:$0xff]
    %v147 = vld [vmem:[#allocation7 + $0x238] sm:$0xff]
    %v148 = vld [vmem:[#allocation7 + $0x240] sm:$0xff]
    %v149 = vld [vmem:[#allocation7 + $0x248] sm:$0xff]
    %v150 = vld [vmem:[#allocation7 + $0x250] sm:$0xff]
    %v151 = vld [vmem:[#allocation7 + $0x258] sm:$0xff]
    %v152 = vld [vmem:[#allocation7 + $0x260] sm:$0xff]
    %v153 = vld [vmem:[#allocation7 + $0x268] sm:$0xff]
    %v154 = vld [vmem:[#allocation7 + $0x270] sm:$0xff]
    %v155 = vld [vmem:[#allocation7 + $0x278] sm:$0xff]
    %v156 = vld [vmem:[#allocation7 + $0x280] sm:$0xff]
    %v157 = vld [vmem:[#allocation7 + $0x288] sm:$0xff]
    %v158 = vld [vmem:[#allocation7 + $0x290] sm:$0xff]
    %v159 = vld [vmem:[#allocation7 + $0x298] sm:$0xff]
    %v160 = vld [vmem:[#allocation7 + $0x2a0] sm:$0xff]
    %v161 = vld [vmem:[#allocation7 + $0x2a8] sm:$0xff]
    %v162 = vld [vmem:[#allocation7 + $0x2b0] sm:$0xff]
    %v163 = vld [vmem:[#allocation7 + $0x2b8] sm:$0xff]
    %v164 = vld [vmem:[#allocation7 + $0x2c0] sm:$0xff]
    %v165 = vld [vmem:[#allocation7 + $0x2c8] sm:$0xff]
    %v166 = vld [vmem:[#allocation7 + $0x2d0] sm:$0xff]
    %v167 = vld [vmem:[#allocation7 + $0x2d8] sm:$0xff]
    %v168 = vld [vmem:[#allocation7 + $0x2e0] sm:$0xff]
    %v169 = vld [vmem:[#allocation7 + $0x2e8] sm:$0xff]
    %v170 = vld [vmem:[#allocation7 + $0x2f0] sm:$0xff]
    %v171 = vld [vmem:[#allocation7 + $0x2f8] sm:$0xff]
    %v172 = vld [vmem:[#allocation7 + $0x300] sm:$0xff]
    %v173 = vld [vmem:[#allocation7 + $0x308] sm:$0xff]
    %v174 = vld [vmem:[#allocation7 + $0x310] sm:$0xff]
    %v175 = vld [vmem:[#allocation7 + $0x318] sm:$0xff]
    %v176 = vld [vmem:[#allocation7 + $0x320] sm:$0xff]
    %v177 = vld [vmem:[#allocation7 + $0x328] sm:$0xff]
    %v178 = vld [vmem:[#allocation7 + $0x330] sm:$0xff]
    %v179 = vld [vmem:[#allocation7 + $0x338] sm:$0xff]
    %v180 = vld [vmem:[#allocation7 + $0x340] sm:$0xff]
    %v181 = vld [vmem:[#allocation7 + $0x348] sm:$0xff]
    %v182 = vld [vmem:[#allocation7 + $0x350] sm:$0xff]
    %v183 = vld [vmem:[#allocation7 + $0x358] sm:$0xff]
    %v184 = vld [vmem:[#allocation7 + $0x360] sm:$0xff]
    %v185 = vld [vmem:[#allocation7 + $0x368] sm:$0xff]
    %v186 = vld [vmem:[#allocation7 + $0x370] sm:$0xff]
    %v187 = vld [vmem:[#allocation7 + $0x378] sm:$0xff]
    %v188 = vld [vmem:[#allocation7 + $0x380] sm:$0xff]
    %v189 = vld [vmem:[#allocation7 + $0x388] sm:$0xff]
    %v190 = vld [vmem:[#allocation7 + $0x390] sm:$0xff]
    %v191 = vld [vmem:[#allocation7 + $0x398] sm:$0xff]
    %v192 = vld [vmem:[#allocation7 + $0x3a0] sm:$0xff]
    %v193 = vld [vmem:[#allocation7 + $0x3a8] sm:$0xff]
    %v194 = vld [vmem:[#allocation7 + $0x3b0] sm:$0xff]
    %v195 = vld [vmem:[#allocation7 + $0x3b8] sm:$0xff]
    %v196 = vld [vmem:[#allocation7 + $0x3c0] sm:$0xff]
    %v197 = vld [vmem:[#allocation7 + $0x3c8] sm:$0xff]
    %v198 = vld [vmem:[#allocation7 + $0x3d0] sm:$0xff]
    %v199 = vld [vmem:[#allocation7 + $0x3d8] sm:$0xff]
    %v200 = vld [vmem:[#allocation7 + $0x3e0] sm:$0xff]
    %v201 = vld [vmem:[#allocation7 + $0x3e8] sm:$0xff]
    %v202 = vld [vmem:[#allocation7 + $0x3f0] sm:$0xff]
    %v203 = vld [vmem:[#allocation7 + $0x3f8] sm:$0xff]
    %v204 = vld [vmem:[#allocation7 + $0x400] sm:$0xff]
    %v205 = vld [vmem:[#allocation7 + $0x408] sm:$0xff]
    %v206 = vld [vmem:[#allocation7 + $0x410] sm:$0xff]
    %v207 = vld [vmem:[#allocation7 + $0x418] sm:$0xff]
    %v208 = vld [vmem:[#allocation7 + $0x420] sm:$0xff]
    %v209 = vld [vmem:[#allocation7 + $0x428] sm:$0xff]
    %v210 = vld [vmem:[#allocation7 + $0x430] sm:$0xff]
    %v211 = vld [vmem:[#allocation7 + $0x438] sm:$0xff]
    %v212 = vld [vmem:[#allocation7 + $0x440] sm:$0xff]
    %v213 = vld [vmem:[#allocation7 + $0x448] sm:$0xff]
    %v214 = vld [vmem:[#allocation7 + $0x450] sm:$0xff]
    %v215 = vld [vmem:[#allocation7 + $0x458] sm:$0xff]
    %v216 = vld [vmem:[#allocation7 + $0x460] sm:$0xff]
    %v217 = vld [vmem:[#allocation7 + $0x468] sm:$0xff]
    %v218 = vld [vmem:[#allocation7 + $0x470] sm:$0xff]
    %v219 = vld [vmem:[#allocation7 + $0x478] sm:$0xff]
    %v220 = vld [vmem:[#allocation7 + $0x480] sm:$0xff]
    %v221 = vld [vmem:[#allocation7 + $0x488] sm:$0xff]
    %v222 = vld [vmem:[#allocation7 + $0x490] sm:$0xff]
    %v223 = vld [vmem:[#allocation7 + $0x498] sm:$0xff]
    %v224 = vld [vmem:[#allocation7 + $0x4a0] sm:$0xff]
    %v225 = vld [vmem:[#allocation7 + $0x4a8] sm:$0xff]
    %v226 = vld [vmem:[#allocation7 + $0x4b0] sm:$0xff]
    %v227 = vld [vmem:[#allocation7 + $0x4b8] sm:$0xff]
    %v228 = vld [vmem:[#allocation7 + $0x4c0] sm:$0xff]
    %v229 = vld [vmem:[#allocation7 + $0x4c8] sm:$0xff]
    %v230 = vld [vmem:[#allocation7 + $0x4d0] sm:$0xff]
    %v231 = vld [vmem:[#allocation7 + $0x4d8] sm:$0xff]
    %v232 = vld [vmem:[#allocation7 + $0x4e0] sm:$0xff]
    %v233 = vld [vmem:[#allocation7 + $0x4e8] sm:$0xff]
    %v234 = vld [vmem:[#allocation7 + $0x4f0] sm:$0xff]
    %v235 = vld [vmem:[#allocation7 + $0x4f8] sm:$0xff]
    %v236 = vld [vmem:[#allocation7 + $0x500] sm:$0xff]
    %v237 = vld [vmem:[#allocation7 + $0x508] sm:$0xff]
    %v238 = vld [vmem:[#allocation7 + $0x510] sm:$0xff]
    %v239 = vld [vmem:[#allocation7 + $0x518] sm:$0xff]
    %v240 = vld [vmem:[#allocation7 + $0x520] sm:$0xff]
    %v241 = vld [vmem:[#allocation7 + $0x528] sm:$0xff]
    %v242 = vld [vmem:[#allocation7 + $0x530] sm:$0xff]
    %v243 = vld [vmem:[#allocation7 + $0x538] sm:$0xff]
    %v244 = vld [vmem:[#allocation7 + $0x540] sm:$0xff]
    %v245 = vld [vmem:[#allocation7 + $0x548] sm:$0xff]
    %v246 = vld [vmem:[#allocation7 + $0x550] sm:$0xff]
    %v247 = vld [vmem:[#allocation7 + $0x558] sm:$0xff]
    %v248 = vld [vmem:[#allocation7 + $0x560] sm:$0xff]
    %v249 = vld [vmem:[#allocation7 + $0x568] sm:$0xff]
    %v250 = vld [vmem:[#allocation7 + $0x570] sm:$0xff]
    %v251 = vld [vmem:[#allocation7 + $0x578] sm:$0xff]
    %v252 = vld [vmem:[#allocation7 + $0x580] sm:$0xff]
    %v253 = vld [vmem:[#allocation7 + $0x588] sm:$0xff]
    %v254 = vld [vmem:[#allocation7 + $0x590] sm:$0xff]
    %v255 = vld [vmem:[#allocation7 + $0x598] sm:$0xff]
    %v256 = vld [vmem:[#allocation7 + $0x5a0] sm:$0xff]
    %v257 = vld [vmem:[#allocation7 + $0x5a8] sm:$0xff]
    %v258 = vld [vmem:[#allocation7 + $0x5b0] sm:$0xff]
    %v259 = vld [vmem:[#allocation7 + $0x5b8] sm:$0xff]
    %v260 = vld [vmem:[#allocation7 + $0x5c0] sm:$0xff]
    %v261 = vld [vmem:[#allocation7 + $0x5c8] sm:$0xff]
    %v262 = vld [vmem:[#allocation7 + $0x5d0] sm:$0xff]
    %v263 = vld [vmem:[#allocation7 + $0x5d8] sm:$0xff]
    %v264 = vld [vmem:[#allocation7 + $0x5e0] sm:$0xff]
    %v265 = vld [vmem:[#allocation7 + $0x5e8] sm:$0xff]
    %v266 = vld [vmem:[#allocation7 + $0x5f0] sm:$0xff]
    %v267 = vld [vmem:[#allocation7 + $0x5f8] sm:$0xff]
    %v268 = vld [vmem:[%s1] sm:$0xff]
    %v269 = vlaneseq
    %v270 = vand.u32 %v269, 127
    %271 = vset.pattern.permute.xlu0 0
    %272 = vperm.xlu0 %271, %v268
    %v273 = vpop.permute.xlu0 %272
    %vm274 = vcmp.eq.s32.totalorder %v273, %v270
    %v275 = vsel %vm274, 1, 0
    %v276 = vcvt.s32.f32 %v275
    %v277 = vld [vmem:[#allocation5] sm:$0xff]
    %v278 = vld [vmem:[#allocation5 + $0x8] sm:$0xff]
    %v279 = vld [vmem:[#allocation5 + $0x10] sm:$0xff]
    %v280 = vld [vmem:[#allocation5 + $0x18] sm:$0xff]
    %vm281 = vcmask 130048
    %v283 = vsel %vm281, %v276, 0
    %285 = vmatpush.msra.mxu0 0.0
    %286 = vmatpush.msra.mxu0 0.0
    %287 = vmatpush.msra.mxu0 0.0
    %288 = vmatpush.msra.mxu0 0.0
    %289 = vmatpush.msra.mxu0 0.0
    %290 = vmatpush.msra.mxu0 0.0
    %291 = vmatpush.msra.mxu0 0.0
    %292 = vmatpush.msra.mxu0 0.0
    %293 = vmatpush.msra.mxu0 0.0
    %294 = vmatpush.msra.mxu0 0.0
    %295 = vmatpush.msra.mxu0 0.0
    %296 = vmatpush.msra.mxu0 0.0
    %297 = vmatpush.msra.mxu0 0.0
    %298 = vmatpush.msra.mxu0 0.0
    %299 = vmatpush.msra.mxu0 %v279
    %300 = vmatpush.msra.mxu0 %v277
    %301 = vmatmul.f32.gmra.mxu0 %v283
    %v302 = vpop.f32.mrf.mxu0
    %v303 = vadd.f32 0.0, %v302
    %304 = vdwg.mxu0
    %305 = vmatpush.msra.mxu0 0.0
    %306 = vmatpush.msra.mxu0 0.0
    %307 = vmatpush.msra.mxu0 0.0
    %308 = vmatpush.msra.mxu0 0.0
    %309 = vmatpush.msra.mxu0 0.0
    %310 = vmatpush.msra.mxu0 0.0
    %311 = vmatpush.msra.mxu0 0.0
    %312 = vmatpush.msra.mxu0 0.0
    %313 = vmatpush.msra.mxu0 0.0
    %314 = vmatpush.msra.mxu0 0.0
    %315 = vmatpush.msra.mxu0 0.0
    %316 = vmatpush.msra.mxu0 0.0
    %317 = vmatpush.msra.mxu0 0.0
    %318 = vmatpush.msra.mxu0 0.0
    %319 = vmatpush.msra.mxu0 %v280
    %320 = vmatpush.msra.mxu0 %v278
    %321 = vmatmul.f32.gmra.mxu0 %v283
    %v322 = vpop.f32.mrf.mxu0
    %v323 = vadd.f32 0.0, %v322
    %324 = vdwg.mxu0
    %325 = vmatpush.msra.mxu0 %v106
    %326 = vmatpush.msra.mxu0 %v104
    %327 = vmatpush.msra.mxu0 %v102
    %328 = vmatpush.msra.mxu0 %v100
    %329 = vmatpush.msra.mxu0 %v98
    %330 = vmatpush.msra.mxu0 %v96
    %331 = vmatpush.msra.mxu0 %v94
    %332 = vmatpush.msra.mxu0 %v92
    %333 = vmatpush.msra.mxu0 %v90
    %334 = vmatpush.msra.mxu0 %v88
    %335 = vmatpush.msra.mxu0 %v86
    %336 = vmatpush.msra.mxu0 %v84
    %337 = vmatpush.msra.mxu0 %v82
    %338 = vmatpush.msra.mxu0 %v80
    %339 = vmatpush.msra.mxu0 %v78
    %340 = vmatpush.msra.mxu0 %v76
    %341 = vmatmul.f32.gmra.mxu0 %v70
    %v342 = vpop.f32.mrf.mxu0
    %v343 = vadd.f32 %v303, %v342
    %344 = vdwg.mxu0
    %345 = vmatpush.msra.mxu0 %v138
    %346 = vmatpush.msra.mxu0 %v136
    %347 = vmatpush.msra.mxu0 %v134
    %348 = vmatpush.msra.mxu0 %v132
    %349 = vmatpush.msra.mxu0 %v130
    %350 = vmatpush.msra.mxu0 %v128
    %351 = vmatpush.msra.mxu0 %v126
    %352 = vmatpush.msra.mxu0 %v124
    %353 = vmatpush.msra.mxu0 %v122
    %354 = vmatpush.msra.mxu0 %v120
    %355 = vmatpush.msra.mxu0 %v118
    %356 = vmatpush.msra.mxu0 %v116
    %357 = vmatpush.msra.mxu0 %v114
    %358 = vmatpush.msra.mxu0 %v112
    %359 = vmatpush.msra.mxu0 %v110
    %360 = vmatpush.msra.mxu0 %v108
    %361 = vmatmul.f32.gmra.mxu0 %v71
    %v362 = vpop.f32.mrf.mxu0
    %v363 = vadd.f32 %v343, %v362
    %364 = vdwg.mxu0
    %365 = vmatpush.msra.mxu0 %v170
    %366 = vmatpush.msra.mxu0 %v168
    %367 = vmatpush.msra.mxu0 %v166
    %368 = vmatpush.msra.mxu0 %v164
    %369 = vmatpush.msra.mxu0 %v162
    %370 = vmatpush.msra.mxu0 %v160
    %371 = vmatpush.msra.mxu0 %v158
    %372 = vmatpush.msra.mxu0 %v156
    %373 = vmatpush.msra.mxu0 %v154
    %374 = vmatpush.msra.mxu0 %v152
    %375 = vmatpush.msra.mxu0 %v150
    %376 = vmatpush.msra.mxu0 %v148
    %377 = vmatpush.msra.mxu0 %v146
    %378 = vmatpush.msra.mxu0 %v144
    %379 = vmatpush.msra.mxu0 %v142
    %380 = vmatpush.msra.mxu0 %v140
    %381 = vmatmul.f32.gmra.mxu0 %v72
    %v382 = vpop.f32.mrf.mxu0
    %v383 = vadd.f32 %v363, %v382
    %384 = vdwg.mxu0
    %385 = vmatpush.msra.mxu0 %v202
    %386 = vmatpush.msra.mxu0 %v200
    %387 = vmatpush.msra.mxu0 %v198
    %388 = vmatpush.msra.mxu0 %v196
    %389 = vmatpush.msra.mxu0 %v194
    %390 = vmatpush.msra.mxu0 %v192
    %391 = vmatpush.msra.mxu0 %v190
    %392 = vmatpush.msra.mxu0 %v188
    %393 = vmatpush.msra.mxu0 %v186
    %394 = vmatpush.msra.mxu0 %v184
    %395 = vmatpush.msra.mxu0 %v182
    %396 = vmatpush.msra.mxu0 %v180
    %397 = vmatpush.msra.mxu0 %v178
    %398 = vmatpush.msra.mxu0 %v176
    %399 = vmatpush.msra.mxu0 %v174
    %400 = vmatpush.msra.mxu0 %v172
    %401 = vmatmul.f32.gmra.mxu0 %v73
    %v402 = vpop.f32.mrf.mxu0
    %v403 = vadd.f32 %v383, %v402
    %404 = vdwg.mxu0
    %405 = vmatpush.msra.mxu0 %v234
    %406 = vmatpush.msra.mxu0 %v232
    %407 = vmatpush.msra.mxu0 %v230
    %408 = vmatpush.msra.mxu0 %v228
    %409 = vmatpush.msra.mxu0 %v226
    %410 = vmatpush.msra.mxu0 %v224
    %411 = vmatpush.msra.mxu0 %v222
    %412 = vmatpush.msra.mxu0 %v220
    %413 = vmatpush.msra.mxu0 %v218
    %414 = vmatpush.msra.mxu0 %v216
    %415 = vmatpush.msra.mxu0 %v214
    %416 = vmatpush.msra.mxu0 %v212
    %417 = vmatpush.msra.mxu0 %v210
    %418 = vmatpush.msra.mxu0 %v208
    %419 = vmatpush.msra.mxu0 %v206
    %420 = vmatpush.msra.mxu0 %v204
    %421 = vmatmul.f32.gmra.mxu0 %v74
    %v422 = vpop.f32.mrf.mxu0
    %v423 = vadd.f32 %v403, %v422
    %424 = vdwg.mxu0
    %425 = vmatpush.msra.mxu0 %v266
    %426 = vmatpush.msra.mxu0 %v264
    %427 = vmatpush.msra.mxu0 %v262
    %428 = vmatpush.msra.mxu0 %v260
    %429 = vmatpush.msra.mxu0 %v258
    %430 = vmatpush.msra.mxu0 %v256
    %431 = vmatpush.msra.mxu0 %v254
    %432 = vmatpush.msra.mxu0 %v252
    %433 = vmatpush.msra.mxu0 %v250
    %434 = vmatpush.msra.mxu0 %v248
    %435 = vmatpush.msra.mxu0 %v246
    %436 = vmatpush.msra.mxu0 %v244
    %437 = vmatpush.msra.mxu0 %v242
    %438 = vmatpush.msra.mxu0 %v240
    %439 = vmatpush.msra.mxu0 %v238
    %440 = vmatpush.msra.mxu0 %v236
    %441 = vmatmul.f32.gmra.mxu0 %v75
    %v442 = vpop.f32.mrf.mxu0
    %v443 = vadd.f32 %v423, %v442
    %444 = vdwg.mxu0
    %445 = vmatpush.msra.mxu0 %v107
    %446 = vmatpush.msra.mxu0 %v105
    %447 = vmatpush.msra.mxu0 %v103
    %448 = vmatpush.msra.mxu0 %v101
    %449 = vmatpush.msra.mxu0 %v99
    %450 = vmatpush.msra.mxu0 %v97
    %451 = vmatpush.msra.mxu0 %v95
    %452 = vmatpush.msra.mxu0 %v93
    %453 = vmatpush.msra.mxu0 %v91
    %454 = vmatpush.msra.mxu0 %v89
    %455 = vmatpush.msra.mxu0 %v87
    %456 = vmatpush.msra.mxu0 %v85
    %457 = vmatpush.msra.mxu0 %v83
    %458 = vmatpush.msra.mxu0 %v81
    %459 = vmatpush.msra.mxu0 %v79
    %460 = vmatpush.msra.mxu0 %v77
    %461 = vmatmul.f32.gmra.mxu0 %v70
    %v462 = vpop.f32.mrf.mxu0
    %v463 = vadd.f32 %v323, %v462
    %464 = vdwg.mxu0
    %465 = vmatpush.msra.mxu0 %v139
    %466 = vmatpush.msra.mxu0 %v137
    %467 = vmatpush.msra.mxu0 %v135
    %468 = vmatpush.msra.mxu0 %v133
    %469 = vmatpush.msra.mxu0 %v131
    %470 = vmatpush.msra.mxu0 %v129
    %471 = vmatpush.msra.mxu0 %v127
    %472 = vmatpush.msra.mxu0 %v125
    %473 = vmatpush.msra.mxu0 %v123
    %474 = vmatpush.msra.mxu0 %v121
    %475 = vmatpush.msra.mxu0 %v119
    %476 = vmatpush.msra.mxu0 %v117
    %477 = vmatpush.msra.mxu0 %v115
    %478 = vmatpush.msra.mxu0 %v113
    %479 = vmatpush.msra.mxu0 %v111
    %480 = vmatpush.msra.mxu0 %v109
    %481 = vmatmul.f32.gmra.mxu0 %v71
    %v482 = vpop.f32.mrf.mxu0
    %v483 = vadd.f32 %v463, %v482
    %484 = vdwg.mxu0
    %485 = vmatpush.msra.mxu0 %v171
    %486 = vmatpush.msra.mxu0 %v169
    %487 = vmatpush.msra.mxu0 %v167
    %488 = vmatpush.msra.mxu0 %v165
    %489 = vmatpush.msra.mxu0 %v163
    %490 = vmatpush.msra.mxu0 %v161
    %491 = vmatpush.msra.mxu0 %v159
    %492 = vmatpush.msra.mxu0 %v157
    %493 = vmatpush.msra.mxu0 %v155
    %494 = vmatpush.msra.mxu0 %v153
    %495 = vmatpush.msra.mxu0 %v151
    %496 = vmatpush.msra.mxu0 %v149
    %497 = vmatpush.msra.mxu0 %v147
    %498 = vmatpush.msra.mxu0 %v145
    %499 = vmatpush.msra.mxu0 %v143
    %500 = vmatpush.msra.mxu0 %v141
    %501 = vmatmul.f32.gmra.mxu0 %v72
    %v502 = vpop.f32.mrf.mxu0
    %v503 = vadd.f32 %v483, %v502
    %504 = vdwg.mxu0
    %505 = vmatpush.msra.mxu0 %v203
    %506 = vmatpush.msra.mxu0 %v201
    %507 = vmatpush.msra.mxu0 %v199
    %508 = vmatpush.msra.mxu0 %v197
    %509 = vmatpush.msra.mxu0 %v195
    %510 = vmatpush.msra.mxu0 %v193
    %511 = vmatpush.msra.mxu0 %v191
    %512 = vmatpush.msra.mxu0 %v189
    %513 = vmatpush.msra.mxu0 %v187
    %514 = vmatpush.msra.mxu0 %v185
    %515 = vmatpush.msra.mxu0 %v183
    %516 = vmatpush.msra.mxu0 %v181
    %517 = vmatpush.msra.mxu0 %v179
    %518 = vmatpush.msra.mxu0 %v177
    %519 = vmatpush.msra.mxu0 %v175
    %520 = vmatpush.msra.mxu0 %v173
    %521 = vmatmul.f32.gmra.mxu0 %v73
    %v522 = vpop.f32.mrf.mxu0
    %v523 = vadd.f32 %v503, %v522
    %524 = vdwg.mxu0
    %525 = vmatpush.msra.mxu0 %v235
    %526 = vmatpush.msra.mxu0 %v233
    %527 = vmatpush.msra.mxu0 %v231
    %528 = vmatpush.msra.mxu0 %v229
    %529 = vmatpush.msra.mxu0 %v227
    %530 = vmatpush.msra.mxu0 %v225
    %531 = vmatpush.msra.mxu0 %v223
    %532 = vmatpush.msra.mxu0 %v221
    %533 = vmatpush.msra.mxu0 %v219
    %534 = vmatpush.msra.mxu0 %v217
    %535 = vmatpush.msra.mxu0 %v215
    %536 = vmatpush.msra.mxu0 %v213
    %537 = vmatpush.msra.mxu0 %v211
    %538 = vmatpush.msra.mxu0 %v209
    %539 = vmatpush.msra.mxu0 %v207
    %540 = vmatpush.msra.mxu0 %v205
    %541 = vmatmul.f32.gmra.mxu0 %v74
    %v542 = vpop.f32.mrf.mxu0
    %v543 = vadd.f32 %v523, %v542
    %544 = vdwg.mxu0
    %545 = vmatpush.msra.mxu0 %v267
    %546 = vmatpush.msra.mxu0 %v265
    %547 = vmatpush.msra.mxu0 %v263
    %548 = vmatpush.msra.mxu0 %v261
    %549 = vmatpush.msra.mxu0 %v259
    %550 = vmatpush.msra.mxu0 %v257
    %551 = vmatpush.msra.mxu0 %v255
    %552 = vmatpush.msra.mxu0 %v253
    %553 = vmatpush.msra.mxu0 %v251
    %554 = vmatpush.msra.mxu0 %v249
    %555 = vmatpush.msra.mxu0 %v247
    %556 = vmatpush.msra.mxu0 %v245
    %557 = vmatpush.msra.mxu0 %v243
    %558 = vmatpush.msra.mxu0 %v241
    %559 = vmatpush.msra.mxu0 %v239
    %560 = vmatpush.msra.mxu0 %v237
    %561 = vmatmul.f32.gmra.mxu0 %v75
    %v562 = vpop.f32.mrf.mxu0
    %v563 = vadd.f32 %v543, %v562
    %564 = vdwg.mxu0
    %v565 = vmax.f32 %v443, 0.0
    %v566 = vmax.f32 %v563, 0.0
    %v567 = vld [vmem:[%s4] sm:$0x3]
    %v569 = vperm.slane %v567, 0
    %v570 = vperm.slane %v567, 1
    %v573 = vmul.f32 %v565, %v569
    %v574 = vmul.f32 %v566, %v570
    %v575 = vadd.f32 %v573, %v574
    %576 = vadd.xlane.f32.xlu0 %v575
    %v577 = vpop.xlane.xlu0 %576
    %v578 = vld [vmem:[#allocation2] sm:$0x1]
    %v580 = vperm.slane %v578, 0
    %v582 = vadd.f32 %v577, %v580
    %vm583 = vcmask 7168
    %584 = vst.msk [vmem:[%s6] sm:$0xff] %vm583, %v582
    // Predicated region
    $region38: #{tpu_custom_call.1} parent=1 // pred_check
      _
    $region39: #{tpu_custom_call.1} parent=1 // pred_check_branch
      %586 = sbr.rel (0) target = $region41
    $region40: #{tpu_custom_call.1} parent=1 // pred_region
      _
    $region41: #{tpu_custom_call.1} parent=1 // pred_fallthru
      _
    // Predicated region
    $region42: #{tpu_custom_call.1} parent=1 // pred_check
      _
    $region43: #{tpu_custom_call.1} parent=1 // pred_check_branch
      %588 = sbr.rel (0) target = $region45
    $region44: #{tpu_custom_call.1} parent=1 // pred_region
      _
    $region45: #{tpu_custom_call.1} parent=1 // pred_fallthru
      _
    %589 = vsyncpa [#allocation4], 1
    %590 = vsyncpa [#allocation6], 1

</llo_original>
